<compile_context>
chip_gen: v7x
topology: tpu7x:2x2x1
jax: 0.10.0
libtpu: 0.0.40
codegen_flags: <defaults>
</compile_context>

<pallas_src>
import jax
import jax.numpy as jnp
from jax.experimental import pallas as pl
from jax.experimental.pallas import tpu as pltpu

HIDDEN = 256
DEFAULT_TB_MAX = 2048                  # max batch rows per grid step
VMEM_LIMIT_BYTES = 48 * 1024 * 1024    # > working set @ tb=2048, < v7x physical


def _round_up(x, m):
    return ((x + m - 1) // m) * m


def qnet_kernel(s_ref, a_ref, w1_ref, b1_ref, w2_ref, b2_ref, w3_ref, b3_ref,
                o_ref):
    # ---- Layer 1: in-kernel lane concat + one MXU dot against (S+A, 256) ----
    x = jnp.concatenate([s_ref[...], a_ref[...]], axis=-1).astype(jnp.bfloat16)
    h1 = jnp.dot(x, w1_ref[...], preferred_element_type=jnp.float32) + b1_ref[...]
    h1 = jnp.maximum(h1, 0.0).astype(jnp.bfloat16)

    # ---- Layer 2: dominant MXU matmul, f32 accumulation -------------------
    h2 = jnp.dot(h1, w2_ref[...], preferred_element_type=jnp.float32) + b2_ref[...]
    h2 = jnp.maximum(h2, 0.0)

    # ---- Layer 3 (256 -> 1): VPU multiply + XLU lane reduce (no MXU pad) ---
    q = jnp.sum(h2 * w3_ref[...], axis=-1, keepdims=True) + b3_ref[...]
    o_ref[...] = q.astype(o_ref.dtype)


def _is_v7x():
    kind = jax.devices()[0].device_kind.lower()
    return ("v7" in kind) or ("7x" in kind)


def _choose_tiling(batch, tb_max, make_even):
    """Pick (tb, num_tiles): tb multiple of 8, padding waste < ~8 rows/tile."""
    padded8 = _round_up(max(batch, 8), 8)
    num_tiles = pl.cdiv(padded8, tb_max)
    if make_even and num_tiles > 1 and num_tiles % 2 == 1:
        num_tiles += 1          # lets CORE_PARALLEL split tiles evenly over 2 TCs
    tb = _round_up(pl.cdiv(padded8, num_tiles), 8)
    return tb, num_tiles


def qnetwork_forward(state, action, params, tb_max=DEFAULT_TB_MAX):
    """Pallas forward: returns (batch, 1) float32 Q-values."""
    w1, b1, w2, b2, w3, b3 = params
    batch, state_dim = state.shape
    action_dim = action.shape[1]
    in_dim = state_dim + action_dim

    # Weight-sized prep only (no (batch, feat) HBM traffic in the wrapper).
    w3_row = w3.astype(jnp.float32).reshape(1, HIDDEN)       # (1, 256) f32

    # Adaptive batch tiling (avoids near-whole-tile padding on ragged batches).
    v7x = _is_v7x()
    tb, num_tiles = _choose_tiling(batch, tb_max, make_even=v7x)
    padded = tb * num_tiles
    if padded != batch:
        pad = padded - batch
        state = jnp.pad(state, ((0, pad), (0, 0)))
        action = jnp.pad(action, ((0, pad), (0, 0)))

    # v7x: shard batch tiles across both TensorCores; other gens: "parallel".
    if v7x and num_tiles > 1 and num_tiles % 2 == 0:
        dim_sem = (pltpu.CORE_PARALLEL,)
    else:
        dim_sem = ("parallel",)

    row_spec = lambda feat: pl.BlockSpec((tb, feat), lambda i: (i, 0))
    res_spec = lambda shape: pl.BlockSpec(shape, lambda i: (0, 0))  # VMEM-resident

    cost = pl.CostEstimate(
        flops=2 * padded * (in_dim * HIDDEN + HIDDEN * HIDDEN + HIDDEN),
        transcendentals=0,
        bytes_accessed=(state.size * state.dtype.itemsize
                        + action.size * action.dtype.itemsize
                        + (w1.size + w2.size) * 2
                        + (b1.size + b2.size + w3_row.size + b3.size) * 4
                        + padded * 4),
    )

    out = pl.pallas_call(
        qnet_kernel,
        out_shape=jax.ShapeDtypeStruct((padded, 1), jnp.float32),
        grid=(num_tiles,),
        in_specs=[
            row_spec(state_dim),            # state tile      (tb, S)
            row_spec(action_dim),           # action tile     (tb, A)
            res_spec((in_dim, HIDDEN)),     # w1  (S+A, 256)  bf16, resident
            res_spec((1, HIDDEN)),          # b1  (1, 256)    f32
            res_spec((HIDDEN, HIDDEN)),     # w2  (256, 256)  bf16, resident
            res_spec((1, HIDDEN)),          # b2  (1, 256)    f32
            res_spec((1, HIDDEN)),          # w3 row (1, 256) f32
            res_spec((1, 1)),               # b3  (1, 1)      f32
        ],
        out_specs=pl.BlockSpec((tb, 1), lambda i: (i, 0)),
        compiler_params=pltpu.CompilerParams(
            dimension_semantics=dim_sem,
            vmem_limit_bytes=VMEM_LIMIT_BYTES,
        ),
        cost_estimate=cost,
    )(state, action, w1, b1, w2, b2, w3_row, b3)

    return out[:batch, :]


def init_params(key, state_dim, action_dim, hidden=HIDDEN):
    """PyTorch-like nn.Linear init (U(+-1/sqrt(fan_in))); bf16 weights, f32 biases."""
    in_dim = state_dim + action_dim
    ks = jax.random.split(key, 6)

    def linear(kw, kb, fan_in, fan_out):
        bound = 1.0 / jnp.sqrt(jnp.float32(fan_in))
        w = jax.random.uniform(kw, (fan_in, fan_out), jnp.float32, -bound, bound)
        b = jax.random.uniform(kb, (1, fan_out), jnp.float32, -bound, bound)
        return w.astype(jnp.bfloat16), b

    w1, b1 = linear(ks[0], ks[1], in_dim, hidden)
    w2, b2 = linear(ks[2], ks[3], hidden, hidden)
    w3, b3 = linear(ks[4], ks[5], hidden, 1)
    return (w1, b1, w2, b2, w3, b3)


def qnetwork_ref(state, action, params):
    """Pure-JAX reference (same bf16-weight / f32-accumulate recipe)."""
    w1, b1, w2, b2, w3, b3 = params
    x = jnp.concatenate([state, action], axis=-1).astype(jnp.bfloat16)
    h1 = jnp.maximum(jnp.dot(x, w1, preferred_element_type=jnp.float32) + b1, 0.0)
    h2 = jnp.maximum(
        jnp.dot(h1.astype(jnp.bfloat16), w2, preferred_element_type=jnp.float32) + b2, 0.0)
    return jnp.dot(h2, w3.astype(jnp.float32),
                   preferred_element_type=jnp.float32) + b3


if __name__ == "__main__":
    key = jax.random.PRNGKey(0)
    k_params, k_s1, k_a1, k_s2, k_a2 = jax.random.split(key, 5)

    state_dim, action_dim = 16, 8
    params = init_params(k_params, state_dim, action_dim)

    # --- Test 1: small single-tile batch ---
    batch = 8
    state = jax.random.normal(k_s1, (batch, state_dim), jnp.float32)
    action = jax.random.normal(k_a1, (batch, action_dim), jnp.float32)
    out = jax.block_until_ready(qnetwork_forward(state, action, params))
    ref = qnetwork_ref(state, action, params)
    assert out.shape == (batch, 1), out.shape
    assert jnp.allclose(out, ref, atol=5e-3, rtol=5e-3), "small-batch mismatch"

    # --- Test 2: multi-tile + ragged batch (batch > tb, not a multiple of tb) ---
    batch2 = 50
    state2 = jax.random.normal(k_s2, (batch2, state_dim), jnp.float32)
    action2 = jax.random.normal(k_a2, (batch2, action_dim), jnp.float32)
    out2 = jax.block_until_ready(
        qnetwork_forward(state2, action2, params, tb_max=16))
    ref2 = qnetwork_ref(state2, action2, params)
    assert out2.shape == (batch2, 1), out2.shape
    assert jnp.allclose(out2, ref2, atol=5e-3, rtol=5e-3), "ragged-batch mismatch"

    print("KERNEL_OK")
</pallas_src>

<mosaic_0001>
module attributes {stable_mosaic.version = 11 : i64} {
  func.func @qnet_kernel(%arg0: i32, %arg1: memref<8x16xf32, #tpu.memory_space<vmem>>, %arg2: memref<8x8xf32, #tpu.memory_space<vmem>>, %arg3: memref<24x256xbf16, #tpu.memory_space<vmem>>, %arg4: memref<1x256xf32, #tpu.memory_space<vmem>>, %arg5: memref<256x256xbf16, #tpu.memory_space<vmem>>, %arg6: memref<1x256xf32, #tpu.memory_space<vmem>>, %arg7: memref<1x256xf32, #tpu.memory_space<vmem>>, %arg8: memref<1x1xf32, #tpu.memory_space<vmem>>, %arg9: memref<8x1xf32, #tpu.memory_space<vmem>>) attributes {dimension_semantics = [#tpu.dimension_semantics<parallel>], iteration_bounds = array<i64: 1>, scalar_prefetch = 0 : i64, scratch_operands = 0 : i64, tpu.core_type = #tpu.core_type<tc>, window_params = [{transform_indices = @transform_0, window_bounds = array<i64: 8, 16>}, {transform_indices = @transform_1, window_bounds = array<i64: 8, 8>}, {pipeline_mode = #tpu.pipeline_mode<synchronous>, transform_indices = @transform_2, window_bounds = array<i64: 24, 256>}, {pipeline_mode = #tpu.pipeline_mode<synchronous>, transform_indices = @transform_3, window_bounds = array<i64: 1, 256>}, {pipeline_mode = #tpu.pipeline_mode<synchronous>, transform_indices = @transform_4, window_bounds = array<i64: 256, 256>}, {pipeline_mode = #tpu.pipeline_mode<synchronous>, transform_indices = @transform_5, window_bounds = array<i64: 1, 256>}, {pipeline_mode = #tpu.pipeline_mode<synchronous>, transform_indices = @transform_6, window_bounds = array<i64: 1, 256>}, {pipeline_mode = #tpu.pipeline_mode<synchronous>, transform_indices = @transform_7, window_bounds = array<i64: 1, 1>}, {transform_indices = @transform_8, window_bounds = array<i64: 8, 1>}]} {
    %c0 = arith.constant 0 : index
    %c0_0 = arith.constant 0 : index
    %0 = vector.load %arg1[%c0, %c0_0] : memref<8x16xf32, #tpu.memory_space<vmem>>, vector<8x16xf32>
    %c0_1 = arith.constant 0 : index
    %c0_2 = arith.constant 0 : index
    %1 = vector.load %arg2[%c0_1, %c0_2] : memref<8x8xf32, #tpu.memory_space<vmem>>, vector<8x8xf32>
    %2 = tpu.concatenate %0, %1 in 1 : vector<8x16xf32>, vector<8x8xf32> -> vector<8x24xf32>
    %3 = arith.truncf %2 : vector<8x24xf32> to vector<8x24xbf16>
    %c0_3 = arith.constant 0 : index
    %c0_4 = arith.constant 0 : index
    %4 = vector.load %arg3[%c0_3, %c0_4] : memref<24x256xbf16, #tpu.memory_space<vmem>>, vector<24x256xbf16>
    %cst = arith.constant dense<0.000000e+00> : vector<8x256xf32>
    %5 = tpu.matmul %3, %4, %cst {dimension_numbers = #tpu.dot_dimension_numbers<[1], [0], [0], [1], [0, 0, 1, 1], [], []>} : vector<8x24xbf16>, vector<24x256xbf16>, vector<8x256xf32> -> vector<8x256xf32>
    %c0_5 = arith.constant 0 : index
    %c0_6 = arith.constant 0 : index
    %6 = vector.load %arg4[%c0_5, %c0_6] : memref<1x256xf32, #tpu.memory_space<vmem>>, vector<1x256xf32>
    %7 = vector.broadcast %6 : vector<1x256xf32> to vector<8x256xf32>
    %8 = arith.addf %5, %7 : vector<8x256xf32>
    %cst_7 = arith.constant 0.000000e+00 : f32
    %9 = vector.broadcast %cst_7 : f32 to vector<8x256xf32>
    %10 = arith.maximumf %8, %9 : vector<8x256xf32>
    %11 = arith.truncf %10 : vector<8x256xf32> to vector<8x256xbf16>
    %c0_8 = arith.constant 0 : index
    %c0_9 = arith.constant 0 : index
    %12 = vector.load %arg5[%c0_8, %c0_9] : memref<256x256xbf16, #tpu.memory_space<vmem>>, vector<256x256xbf16>
    %cst_10 = arith.constant dense<0.000000e+00> : vector<8x256xf32>
    %13 = tpu.matmul %11, %12, %cst_10 {dimension_numbers = #tpu.dot_dimension_numbers<[1], [0], [0], [1], [0, 0, 1, 1], [], []>} : vector<8x256xbf16>, vector<256x256xbf16>, vector<8x256xf32> -> vector<8x256xf32>
    %c0_11 = arith.constant 0 : index
    %c0_12 = arith.constant 0 : index
    %14 = vector.load %arg6[%c0_11, %c0_12] : memref<1x256xf32, #tpu.memory_space<vmem>>, vector<1x256xf32>
    %15 = vector.broadcast %14 : vector<1x256xf32> to vector<8x256xf32>
    %16 = arith.addf %13, %15 : vector<8x256xf32>
    %cst_13 = arith.constant 0.000000e+00 : f32
    %17 = vector.broadcast %cst_13 : f32 to vector<8x256xf32>
    %18 = arith.maximumf %16, %17 : vector<8x256xf32>
    %c0_14 = arith.constant 0 : index
    %c0_15 = arith.constant 0 : index
    %19 = vector.load %arg7[%c0_14, %c0_15] : memref<1x256xf32, #tpu.memory_space<vmem>>, vector<1x256xf32>
    %20 = vector.broadcast %19 : vector<1x256xf32> to vector<8x256xf32>
    %21 = arith.mulf %18, %20 : vector<8x256xf32>
    %cst_16 = arith.constant dense<0.000000e+00> : vector<8xf32>
    %22 = vector.multi_reduction <add>, %21, %cst_16 [1] : vector<8x256xf32> to vector<8xf32>
    %23 = vector.shape_cast %22 : vector<8xf32> to vector<8x1xf32>
    %c0_17 = arith.constant 0 : index
    %c0_18 = arith.constant 0 : index
    %24 = vector.load %arg8[%c0_17, %c0_18] : memref<1x1xf32, #tpu.memory_space<vmem>>, vector<1x1xf32>
    %25 = vector.broadcast %24 : vector<1x1xf32> to vector<8x1xf32>
    %26 = arith.addf %23, %25 : vector<8x1xf32>
    %c0_19 = arith.constant 0 : index
    %c0_20 = arith.constant 0 : index
    %27 = vector.load %arg9[%c0_19, %c0_20] : memref<8x1xf32, #tpu.memory_space<vmem>>, vector<8x1xf32>
    tpu.vector_store %arg9[%c0_19, %c0_20], %26 {strides = array<i32>} : memref<8x1xf32, #tpu.memory_space<vmem>>, vector<8x1xf32>,
    return
  }
  func.func @transform_0(%arg0: i32) -> (i32, i32) {
    %c0_i32 = arith.constant 0 : i32
    %c0_i32_0 = arith.constant 0 : i32
    return %arg0, %c0_i32 : i32, i32
  }
  func.func @transform_1(%arg0: i32) -> (i32, i32) {
    %c0_i32 = arith.constant 0 : i32
    %c0_i32_0 = arith.constant 0 : i32
    return %arg0, %c0_i32 : i32, i32
  }
  func.func @transform_2(%arg0: i32) -> (i32, i32) {
    %c0_i32 = arith.constant 0 : i32
    %c0_i32_0 = arith.constant 0 : i32
    %c0_i32_1 = arith.constant 0 : i32
    return %c0_i32, %c0_i32_0 : i32, i32
  }
  func.func @transform_3(%arg0: i32) -> (i32, i32) {
    %c0_i32 = arith.constant 0 : i32
    %c0_i32_0 = arith.constant 0 : i32
    %c0_i32_1 = arith.constant 0 : i32
    return %c0_i32, %c0_i32_0 : i32, i32
  }
  func.func @transform_4(%arg0: i32) -> (i32, i32) {
    %c0_i32 = arith.constant 0 : i32
    %c0_i32_0 = arith.constant 0 : i32
    %c0_i32_1 = arith.constant 0 : i32
    return %c0_i32, %c0_i32_0 : i32, i32
  }
  func.func @transform_5(%arg0: i32) -> (i32, i32) {
    %c0_i32 = arith.constant 0 : i32
    %c0_i32_0 = arith.constant 0 : i32
    %c0_i32_1 = arith.constant 0 : i32
    return %c0_i32, %c0_i32_0 : i32, i32
  }
  func.func @transform_6(%arg0: i32) -> (i32, i32) {
    %c0_i32 = arith.constant 0 : i32
    %c0_i32_0 = arith.constant 0 : i32
    %c0_i32_1 = arith.constant 0 : i32
    return %c0_i32, %c0_i32_0 : i32, i32
  }
  func.func @transform_7(%arg0: i32) -> (i32, i32) {
    %c0_i32 = arith.constant 0 : i32
    %c0_i32_0 = arith.constant 0 : i32
    %c0_i32_1 = arith.constant 0 : i32
    return %c0_i32, %c0_i32_0 : i32, i32
  }
  func.func @transform_8(%arg0: i32) -> (i32, i32) {
    %c0_i32 = arith.constant 0 : i32
    %c0_i32_0 = arith.constant 0 : i32
    return %arg0, %c0_i32 : i32, i32
  }
}

</mosaic_0001>

<llo_original>
// kernel: tpu_custom_call.1
$region0: #{tpu_custom_call.1}
  #allocation0 [shape = 'u32[]', space=smem, size = 0x4, offset = 0x4, fixed_abs, tag = 'smem constant byte address 0x4 - core index']
  #allocation1 [shape = 'u32[144,128]{1,0:T(1,128)}', space=vmem, size = 0x12000, scoped, tag = 'internal scratch']
  #allocation2 [shape = 'f32[1,1]{1,0:T(1,128)S(1)}', space=vmem, size = 0x200, scoped, tag = 'scoped memory for tpu_custom_call.1']
  %s0 = inlined_call_operand.hbm [shape: f32[8,16], index: 0, kind: input, shape index: {}]
  %s1 = inlined_call_operand.hbm [shape: f32[8,8], index: 1, kind: input, shape index: {}]
  %s2 = inlined_call_operand.hbm [shape: bf16[24,256], index: 2, kind: input, shape index: {}]
  %s3 = inlined_call_operand.vmem [shape: f32[1,256], index: 3, kind: input, shape index: {}]
  %s4 = inlined_call_operand.hbm [shape: bf16[256,256], index: 4, kind: input, shape index: {}]
  %s5 = inlined_call_operand.vmem [shape: f32[1,256], index: 5, kind: input, shape index: {}]
  %s6 = inlined_call_operand.vmem [shape: f32[1,256], index: 6, kind: input, shape index: {}]
  %s7 = inlined_call_operand.<no memory space> [shape: f32[1,1], index: 7, kind: input, shape index: {}]
  %s8 = inlined_call_operand.vmem [shape: f32[8,1], index: 8, kind: output, shape index: {}]
  %s9 = sld [smem:[#allocation0]]
  $region58: #{tpu_custom_call.1} parent=0
    _
  %s11 = ssub.s32 1, %s9
  %s12 = scalar_select 0, %s11, %s9
  %v13 = vstv %s7
  %14 = vst [vmem:[#allocation2] sm:$0x1] %v13
  $region1: #{tpu_custom_call.1} parent=0
    #allocation3 [shape = 'u8[4096]{0}', space=vmem, size = 0x1000, scoped, tag = 'input window, operand 0, single buffered']
    #allocation4 [shape = 's32[1]{0}', space=sflag, size = 0x4, scoped, tag = 'scoped memory for tpu_custom_call.1']
    #allocation5 [shape = 'u8[4096]{0}', space=vmem, size = 0x1000, scoped, tag = 'input window, operand 1, single buffered']
    #allocation6 [shape = 's32[1]{0}', space=sflag, size = 0x4, scoped, tag = 'scoped memory for tpu_custom_call.1']
    #allocation7 [shape = 'u8[12288]{0}', space=vmem, size = 0x3000, scoped, tag = 'input window, operand 2, single buffered']
    #allocation8 [shape = 'u8[131072]{0}', space=vmem, size = 0x20000, scoped, tag = 'input window, operand 4, single buffered']
    #allocation9 [shape = 's32[1]{0}', space=sflag, size = 0x4, scoped, tag = 'scoped memory for tpu_custom_call.1']
    %15 = vsyncpa [#allocation4], 0
    %16 = vsyncpa [#allocation6], 0
    %17 = vsyncpa [#allocation9], 0
    // Predicated region
    $region2: #{tpu_custom_call.1} parent=1 // pred_check
      _
    $region3: #{tpu_custom_call.1} parent=1 // pred_check_branch
      %19 = sbr.rel (0) target = $region5
    $region4: #{tpu_custom_call.1} parent=1 // pred_region
      %s21 = ssub.s32 128, 128
      %22 = vsyncadd [#allocation4], %s21
      %s24 = sshll.u32 [#allocation3], 4
      %s25 = int_to_ptr.vmem [resolvable:$true] %s24
      %27 = dma.hbm_to_vmem [thread:$0]  %s0, 128, %s25, [#allocation4]
    $region5: #{tpu_custom_call.1} parent=1 // pred_fallthru
      _
    // Predicated region
    $region6: #{tpu_custom_call.1} parent=1 // pred_check
      _
    $region7: #{tpu_custom_call.1} parent=1 // pred_check_branch
      %29 = sbr.rel (0) target = $region9
    $region8: #{tpu_custom_call.1} parent=1 // pred_region
      %s31 = ssub.s32 128, 128
      %32 = vsyncadd [#allocation6], %s31
      %s34 = sshll.u32 [#allocation5], 4
      %s35 = int_to_ptr.vmem [resolvable:$true] %s34
      %37 = dma.hbm_to_vmem [thread:$0]  %s1, 128, %s35, [#allocation6]
    $region9: #{tpu_custom_call.1} parent=1 // pred_fallthru
      _
    // Predicated region
    $region10: #{tpu_custom_call.1} parent=1 // pred_check
      _
    $region11: #{tpu_custom_call.1} parent=1 // pred_check_branch
      %39 = sbr.rel (0) target = $region13
    $region12: #{tpu_custom_call.1} parent=1 // pred_region
      %s41 = ssub.s32 384, 384
      %42 = vsyncadd [#allocation6], %s41
      %s43 = sshll.u32 [#allocation7], 4
      %s44 = int_to_ptr.vmem [resolvable:$true] %s43
      %49 = dma.hbm_to_vmem [thread:$0]  %s2, 384, %s44, [#allocation6], 128, 128, 8
    $region13: #{tpu_custom_call.1} parent=1 // pred_fallthru
      _
    // Predicated region
    $region14: #{tpu_custom_call.1} parent=1 // pred_check
      _
    $region15: #{tpu_custom_call.1} parent=1 // pred_check_branch
      %51 = sbr.rel (0) target = $region17
    $region16: #{tpu_custom_call.1} parent=1 // pred_region
      _
    $region17: #{tpu_custom_call.1} parent=1 // pred_fallthru
      _
    // Predicated region
    $region18: #{tpu_custom_call.1} parent=1 // pred_check
      _
    $region19: #{tpu_custom_call.1} parent=1 // pred_check_branch
      %53 = sbr.rel (0) target = $region21
    $region20: #{tpu_custom_call.1} parent=1 // pred_region
      %s55 = ssub.s32 4096, 4096
      %56 = vsyncadd [#allocation9], %s55
      %s57 = sshll.u32 [#allocation8], 4
      %s58 = int_to_ptr.vmem [resolvable:$true] %s57
      %63 = dma.hbm_to_vmem [thread:$0]  %s4, 4096, %s58, [#allocation9], 128, 128, 8
    $region21: #{tpu_custom_call.1} parent=1 // pred_fallthru
      _
    // Predicated region
    $region22: #{tpu_custom_call.1} parent=1 // pred_check
      _
    $region23: #{tpu_custom_call.1} parent=1 // pred_check_branch
      %65 = sbr.rel (0) target = $region25
    $region24: #{tpu_custom_call.1} parent=1 // pred_region
      _
    $region25: #{tpu_custom_call.1} parent=1 // pred_fallthru
      _
    // Predicated region
    $region26: #{tpu_custom_call.1} parent=1 // pred_check
      _
    $region27: #{tpu_custom_call.1} parent=1 // pred_check_branch
      %67 = sbr.rel (0) target = $region29
    $region28: #{tpu_custom_call.1} parent=1 // pred_region
      _
    $region29: #{tpu_custom_call.1} parent=1 // pred_fallthru
      _
    // Predicated region
    $region30: #{tpu_custom_call.1} parent=1 // pred_check
      _
    $region31: #{tpu_custom_call.1} parent=1 // pred_check_branch
      %69 = sbr.rel (0) target = $region33
    $region32: #{tpu_custom_call.1} parent=1 // pred_region
      _
    $region33: #{tpu_custom_call.1} parent=1 // pred_fallthru
      _
    // Predicated region
    $region34: #{tpu_custom_call.1} parent=1 // pred_check
      _
    $region35: #{tpu_custom_call.1} parent=1 // pred_check_branch
      %71 = sbr.rel (0) target = $region37
    $region36: #{tpu_custom_call.1} parent=1 // pred_region
      %72 = dma.done [#allocation4], 128
    $region37: #{tpu_custom_call.1} parent=1 // pred_fallthru
      _
    // Predicated region
    $region38: #{tpu_custom_call.1} parent=1 // pred_check
      _
    $region39: #{tpu_custom_call.1} parent=1 // pred_check_branch
      %74 = sbr.rel (0) target = $region41
    $region40: #{tpu_custom_call.1} parent=1 // pred_region
      %75 = dma.done [#allocation6], 128
    $region41: #{tpu_custom_call.1} parent=1 // pred_fallthru
      _
    // Predicated region
    $region42: #{tpu_custom_call.1} parent=1 // pred_check
      _
    $region43: #{tpu_custom_call.1} parent=1 // pred_check_branch
      %77 = sbr.rel (0) target = $region45
    $region44: #{tpu_custom_call.1} parent=1 // pred_region
      %78 = dma.done [#allocation6], 384
    $region45: #{tpu_custom_call.1} parent=1 // pred_fallthru
      _
    // Predicated region
    $region46: #{tpu_custom_call.1} parent=1 // pred_check
      _
    $region47: #{tpu_custom_call.1} parent=1 // pred_check_branch
      %80 = sbr.rel (0) target = $region49
    $region48: #{tpu_custom_call.1} parent=1 // pred_region
      %81 = dma.done [#allocation9], 4096
    $region49: #{tpu_custom_call.1} parent=1 // pred_fallthru
      _
    %v83 = vld [vmem:[#allocation3] sm:$0xff]
    %v84 = vld [vmem:[#allocation5] sm:$0xff]
    %86 = vrot.lane.b32.xlu0 %v84, 16
    %v87 = vpop.permute.xlu0 %86
    %vm89 = vcmask 130048
    %v90 = vsel %vm89, %v83, %v87
    %v91 = vpack.c.bf16 %v90, %v90
    %v92 = vld [vmem:[#allocation7] sm:$0xff]
    %v93 = vld [vmem:[#allocation7 + $0x8] sm:$0xff]
    %v94 = vld [vmem:[#allocation7 + $0x10] sm:$0xff]
    %v95 = vld [vmem:[%s3] sm:$0x3]
    %v97 = vlaneseq
    %v98 = vshrl.u32 %v97, 7
    %v99 = vsub.s32 0, %v98
    %v100 = vrot.slane %v95, %v99
    %v101 = vlaneseq
    %v102 = vshrl.u32 %v101, 7
    %v103 = vsub.s32 1, %v102
    %v104 = vrot.slane %v95, %v103
    %v110 = vunpack.c.l.b16 %v92
    %v111 = vunpack.c.h.b16 %v92
    %v112 = vunpack.c.l.b16 %v93
    %v113 = vunpack.c.h.b16 %v93
    %v114 = vunpack.c.l.b16 %v94
    %v115 = vunpack.c.h.b16 %v94
    %v116 = vpack.c.b16 %v112, %v110
    %v117 = vpack.c.b16 %v113, %v111
    %v118 = vpack.c.b16 %v114, %v114
    %v119 = vpack.c.b16 %v115, %v115
    %vm122 = vcmask 195584
    %v124 = vsel %vm122, %v91, 0
    %vm126 = vcmask 1043456
    %v128 = vsel %vm126, %v118, 0
    %v131 = vsel %vm126, %v119, 0
    %133 = vmatprep.subr.bf16.mxu0 %v117
    %134 = vmatpush1.bf16.msra.mxu0 %v116
    %135 = vmatprep.subr.bf16.mxu0 %v131
    %136 = vmatpush1.bf16.msra.mxu0 %v128
    %137 = vmatprep.subr.bf16.mxu0 0
    %138 = vmatpush1.bf16.msra.mxu0 0
    %139 = vmatprep.subr.bf16.mxu0 0
    %140 = vmatpush1.bf16.msra.mxu0 0
    %141 = vmatprep.subr.bf16.mxu0 0
    %142 = vmatpush1.bf16.msra.mxu0 0
    %143 = vmatprep.subr.bf16.mxu0 0
    %144 = vmatpush1.bf16.msra.mxu0 0
    %145 = vmatprep.subr.bf16.mxu0 0
    %146 = vmatpush1.bf16.msra.mxu0 0
    %147 = vmatprep.subr.bf16.mxu0 0
    %148 = vmatpush1.bf16.msra.mxu0 0
    %149 = vmatprep.subr.bf16.mxu0 0
    %150 = vmatpush1.bf16.msra.mxu0 0
    %151 = vmatprep.subr.bf16.mxu0 0
    %152 = vmatpush1.bf16.msra.mxu0 0
    %153 = vmatprep.subr.bf16.mxu0 0
    %154 = vmatpush1.bf16.msra.mxu0 0
    %155 = vmatprep.subr.bf16.mxu0 0
    %156 = vmatpush1.bf16.msra.mxu0 0
    %157 = vmatprep.subr.bf16.mxu0 0
    %158 = vmatpush1.bf16.msra.mxu0 0
    %159 = vmatprep.subr.bf16.mxu0 0
    %160 = vmatpush1.bf16.msra.mxu0 0
    %161 = vmatprep.subr.bf16.mxu0 0
    %162 = vmatpush1.bf16.msra.mxu0 0
    %163 = vmatprep.subr.bf16.mxu0 0
    %164 = vmatpush1.bf16.msra.mxu0 0
    %165 = vmatprep.mubr.bf16.mxu0 0
    %166 = vmatmul.mubr.bf16.gmra.mrb[0].mxu0 %v124
    %v167 = vpop.f32.mrb[0].mxu0
    %v168 = vadd.f32 %v100, %v167
    %v169 = vpop.f32.mrb[0].mxu0
    %v170 = vadd.f32 %v104, %v169
    %v171 = vpop.f32.mrb[0].mxu0
    %v172 = vpop.f32.mrb[0].mxu0
    %173 = vdwg.mxu0
    %v174 = vmax.f32 %v168, 0.0
    %v175 = vmax.f32 %v170, 0.0
    %v176 = vpack.c.bf16 %v174, %v174
    %v177 = vpack.c.bf16 %v175, %v175
    %v178 = vld [vmem:[#allocation8] sm:$0xff]
    %v179 = vld [vmem:[#allocation8 + $0x8] sm:$0xff]
    %v180 = vld [vmem:[#allocation8 + $0x10] sm:$0xff]
    %v181 = vld [vmem:[#allocation8 + $0x18] sm:$0xff]
    %v182 = vld [vmem:[#allocation8 + $0x20] sm:$0xff]
    %v183 = vld [vmem:[#allocation8 + $0x28] sm:$0xff]
    %v184 = vld [vmem:[#allocation8 + $0x30] sm:$0xff]
    %v185 = vld [vmem:[#allocation8 + $0x38] sm:$0xff]
    %v186 = vld [vmem:[#allocation8 + $0x40] sm:$0xff]
    %v187 = vld [vmem:[#allocation8 + $0x48] sm:$0xff]
    %v188 = vld [vmem:[#allocation8 + $0x50] sm:$0xff]
    %v189 = vld [vmem:[#allocation8 + $0x58] sm:$0xff]
    %v190 = vld [vmem:[#allocation8 + $0x60] sm:$0xff]
    %v191 = vld [vmem:[#allocation8 + $0x68] sm:$0xff]
    %v192 = vld [vmem:[#allocation8 + $0x70] sm:$0xff]
    %v193 = vld [vmem:[#allocation8 + $0x78] sm:$0xff]
    %v194 = vld [vmem:[#allocation8 + $0x80] sm:$0xff]
    %v195 = vld [vmem:[#allocation8 + $0x88] sm:$0xff]
    %v196 = vld [vmem:[#allocation8 + $0x90] sm:$0xff]
    %v197 = vld [vmem:[#allocation8 + $0x98] sm:$0xff]
    %v198 = vld [vmem:[#allocation8 + $0xa0] sm:$0xff]
    %v199 = vld [vmem:[#allocation8 + $0xa8] sm:$0xff]
    %v200 = vld [vmem:[#allocation8 + $0xb0] sm:$0xff]
    %v201 = vld [vmem:[#allocation8 + $0xb8] sm:$0xff]
    %v202 = vld [vmem:[#allocation8 + $0xc0] sm:$0xff]
    %v203 = vld [vmem:[#allocation8 + $0xc8] sm:$0xff]
    %v204 = vld [vmem:[#allocation8 + $0xd0] sm:$0xff]
    %v205 = vld [vmem:[#allocation8 + $0xd8] sm:$0xff]
    %v206 = vld [vmem:[#allocation8 + $0xe0] sm:$0xff]
    %v207 = vld [vmem:[#allocation8 + $0xe8] sm:$0xff]
    %v208 = vld [vmem:[#allocation8 + $0xf0] sm:$0xff]
    %v209 = vld [vmem:[#allocation8 + $0xf8] sm:$0xff]
    %v210 = vld [vmem:[%s5] sm:$0x3]
    %v212 = vlaneseq
    %v213 = vshrl.u32 %v212, 7
    %v214 = vsub.s32 0, %v213
    %v215 = vrot.slane %v210, %v214
    %v216 = vlaneseq
    %v217 = vshrl.u32 %v216, 7
    %v218 = vsub.s32 1, %v217
    %v219 = vrot.slane %v210, %v218
    %v254 = vunpack.c.l.b16 %v178
    %v255 = vunpack.c.h.b16 %v178
    %v256 = vunpack.c.l.b16 %v179
    %v257 = vunpack.c.h.b16 %v179
    %v258 = vunpack.c.l.b16 %v180
    %v259 = vunpack.c.h.b16 %v180
    %v260 = vunpack.c.l.b16 %v181
    %v261 = vunpack.c.h.b16 %v181
    %v262 = vunpack.c.l.b16 %v182
    %v263 = vunpack.c.h.b16 %v182
    %v264 = vunpack.c.l.b16 %v183
    %v265 = vunpack.c.h.b16 %v183
    %v266 = vunpack.c.l.b16 %v184
    %v267 = vunpack.c.h.b16 %v184
    %v268 = vunpack.c.l.b16 %v185
    %v269 = vunpack.c.h.b16 %v185
    %v270 = vunpack.c.l.b16 %v186
    %v271 = vunpack.c.h.b16 %v186
    %v272 = vunpack.c.l.b16 %v187
    %v273 = vunpack.c.h.b16 %v187
    %v274 = vunpack.c.l.b16 %v188
    %v275 = vunpack.c.h.b16 %v188
    %v276 = vunpack.c.l.b16 %v189
    %v277 = vunpack.c.h.b16 %v189
    %v278 = vunpack.c.l.b16 %v190
    %v279 = vunpack.c.h.b16 %v190
    %v280 = vunpack.c.l.b16 %v191
    %v281 = vunpack.c.h.b16 %v191
    %v282 = vunpack.c.l.b16 %v192
    %v283 = vunpack.c.h.b16 %v192
    %v284 = vunpack.c.l.b16 %v193
    %v285 = vunpack.c.h.b16 %v193
    %v286 = vunpack.c.l.b16 %v194
    %v287 = vunpack.c.h.b16 %v194
    %v288 = vunpack.c.l.b16 %v195
    %v289 = vunpack.c.h.b16 %v195
    %v290 = vunpack.c.l.b16 %v196
    %v291 = vunpack.c.h.b16 %v196
    %v292 = vunpack.c.l.b16 %v197
    %v293 = vunpack.c.h.b16 %v197
    %v294 = vunpack.c.l.b16 %v198
    %v295 = vunpack.c.h.b16 %v198
    %v296 = vunpack.c.l.b16 %v199
    %v297 = vunpack.c.h.b16 %v199
    %v298 = vunpack.c.l.b16 %v200
    %v299 = vunpack.c.h.b16 %v200
    %v300 = vunpack.c.l.b16 %v201
    %v301 = vunpack.c.h.b16 %v201
    %v302 = vunpack.c.l.b16 %v202
    %v303 = vunpack.c.h.b16 %v202
    %v304 = vunpack.c.l.b16 %v203
    %v305 = vunpack.c.h.b16 %v203
    %v306 = vunpack.c.l.b16 %v204
    %v307 = vunpack.c.h.b16 %v204
    %v308 = vunpack.c.l.b16 %v205
    %v309 = vunpack.c.h.b16 %v205
    %v310 = vunpack.c.l.b16 %v206
    %v311 = vunpack.c.h.b16 %v206
    %v312 = vunpack.c.l.b16 %v207
    %v313 = vunpack.c.h.b16 %v207
    %v314 = vunpack.c.l.b16 %v208
    %v315 = vunpack.c.h.b16 %v208
    %v316 = vunpack.c.l.b16 %v209
    %v317 = vunpack.c.h.b16 %v209
    %v318 = vpack.c.b16 %v256, %v254
    %v319 = vpack.c.b16 %v257, %v255
    %v320 = vpack.c.b16 %v260, %v258
    %v321 = vpack.c.b16 %v261, %v259
    %v322 = vpack.c.b16 %v264, %v262
    %v323 = vpack.c.b16 %v265, %v263
    %v324 = vpack.c.b16 %v268, %v266
    %v325 = vpack.c.b16 %v269, %v267
    %v326 = vpack.c.b16 %v272, %v270
    %v327 = vpack.c.b16 %v273, %v271
    %v328 = vpack.c.b16 %v276, %v274
    %v329 = vpack.c.b16 %v277, %v275
    %v330 = vpack.c.b16 %v280, %v278
    %v331 = vpack.c.b16 %v281, %v279
    %v332 = vpack.c.b16 %v284, %v282
    %v333 = vpack.c.b16 %v285, %v283
    %v334 = vpack.c.b16 %v288, %v286
    %v335 = vpack.c.b16 %v289, %v287
    %v336 = vpack.c.b16 %v292, %v290
    %v337 = vpack.c.b16 %v293, %v291
    %v338 = vpack.c.b16 %v296, %v294
    %v339 = vpack.c.b16 %v297, %v295
    %v340 = vpack.c.b16 %v300, %v298
    %v341 = vpack.c.b16 %v301, %v299
    %v342 = vpack.c.b16 %v304, %v302
    %v343 = vpack.c.b16 %v305, %v303
    %v344 = vpack.c.b16 %v308, %v306
    %v345 = vpack.c.b16 %v309, %v307
    %v346 = vpack.c.b16 %v312, %v310
    %v347 = vpack.c.b16 %v313, %v311
    %v348 = vpack.c.b16 %v316, %v314
    %v349 = vpack.c.b16 %v317, %v315
    %382 = vmatprep.subr.bf16.mxu0 %v319
    %383 = vmatpush1.bf16.msra.mxu0 %v318
    %384 = vmatprep.subr.bf16.mxu0 %v321
    %385 = vmatpush1.bf16.msra.mxu0 %v320
    %386 = vmatprep.subr.bf16.mxu0 %v323
    %387 = vmatpush1.bf16.msra.mxu0 %v322
    %388 = vmatprep.subr.bf16.mxu0 %v325
    %389 = vmatpush1.bf16.msra.mxu0 %v324
    %390 = vmatprep.subr.bf16.mxu0 %v327
    %391 = vmatpush1.bf16.msra.mxu0 %v326
    %392 = vmatprep.subr.bf16.mxu0 %v329
    %393 = vmatpush1.bf16.msra.mxu0 %v328
    %394 = vmatprep.subr.bf16.mxu0 %v331
    %395 = vmatpush1.bf16.msra.mxu0 %v330
    %396 = vmatprep.subr.bf16.mxu0 %v333
    %397 = vmatpush1.bf16.msra.mxu0 %v332
    %398 = vmatprep.subr.bf16.mxu0 %v335
    %399 = vmatpush1.bf16.msra.mxu0 %v334
    %400 = vmatprep.subr.bf16.mxu0 %v337
    %401 = vmatpush1.bf16.msra.mxu0 %v336
    %402 = vmatprep.subr.bf16.mxu0 %v339
    %403 = vmatpush1.bf16.msra.mxu0 %v338
    %404 = vmatprep.subr.bf16.mxu0 %v341
    %405 = vmatpush1.bf16.msra.mxu0 %v340
    %406 = vmatprep.subr.bf16.mxu0 %v343
    %407 = vmatpush1.bf16.msra.mxu0 %v342
    %408 = vmatprep.subr.bf16.mxu0 %v345
    %409 = vmatpush1.bf16.msra.mxu0 %v344
    %410 = vmatprep.subr.bf16.mxu0 %v347
    %411 = vmatpush1.bf16.msra.mxu0 %v346
    %412 = vmatprep.subr.bf16.mxu0 %v349
    %413 = vmatpush1.bf16.msra.mxu0 %v348
    %414 = vmatprep.mubr.bf16.mxu0 %v177
    %415 = vmatmul.mubr.bf16.gmra.mrb[0].mxu0 %v176
    %v416 = vpop.f32.mrb[0].mxu0
    %v417 = vadd.f32 %v215, %v416
    %v418 = vpop.f32.mrb[0].mxu0
    %v419 = vadd.f32 %v219, %v418
    %v420 = vpop.f32.mrb[0].mxu0
    %v421 = vpop.f32.mrb[0].mxu0
    %422 = vdwg.mxu0
    %v423 = vmax.f32 %v417, 0.0
    %v424 = vmax.f32 %v419, 0.0
    %v425 = vld [vmem:[%s6] sm:$0x3]
    %v427 = vlaneseq
    %v428 = vshrl.u32 %v427, 7
    %v429 = vsub.s32 0, %v428
    %v430 = vrot.slane %v425, %v429
    %v431 = vlaneseq
    %v432 = vshrl.u32 %v431, 7
    %v433 = vsub.s32 1, %v432
    %v434 = vrot.slane %v425, %v433
    %v437 = vmul.f32 %v423, %v430
    %v438 = vmul.f32 %v424, %v434
    %v439 = vadd.f32 %v437, %v438
    %440 = vadd.xlane.f32.xlu0 %v439
    %v441 = vpop.xlane.xlu0 %440
    %v442 = vld [vmem:[#allocation2] sm:$0x1]
    %v444 = vlaneseq
    %v445 = vshrl.u32 %v444, 7
    %v446 = vsub.s32 0, %v445
    %v447 = vrot.slane %v442, %v446
    %v449 = vadd.f32 %v441, %v447
    %vm450 = vcmask 7168
    %451 = vst.msk [vmem:[%s8] sm:$0xff] %vm450, %v449
    // Predicated region
    $region50: #{tpu_custom_call.1} parent=1 // pred_check
      _
    $region51: #{tpu_custom_call.1} parent=1 // pred_check_branch
      %453 = sbr.rel (0) target = $region53
    $region52: #{tpu_custom_call.1} parent=1 // pred_region
      _
    $region53: #{tpu_custom_call.1} parent=1 // pred_fallthru
      _
    // Predicated region
    $region54: #{tpu_custom_call.1} parent=1 // pred_check
      _
    $region55: #{tpu_custom_call.1} parent=1 // pred_check_branch
      %455 = sbr.rel (0) target = $region57
    $region56: #{tpu_custom_call.1} parent=1 // pred_region
      _
    $region57: #{tpu_custom_call.1} parent=1 // pred_fallthru
      _
    %456 = vsyncpa [#allocation4], 1
    %457 = vsyncpa [#allocation6], 1
    %458 = vsyncpa [#allocation9], 1

</llo_original>
